<compile_context>
chip_gen: v6e
topology: v6e:2x2x1
jax: 0.10.0
libtpu: 0.0.40
codegen_flags: <defaults>
</compile_context>

<pallas_src>
import functools

import jax
import jax.numpy as jnp
from jax.experimental import pallas as pl
from jax.experimental.pallas import tpu as pltpu


def _rmsnorm_kernel(x_ref, w_ref, o_ref, *, eps):
    # x_ref: (block_rows, H), w_ref: (1, H), o_ref: (block_rows, H)
    x = x_ref[...]
    x_f32 = x.astype(jnp.float32)
    # variance = mean(x^2) over the hidden axis, in float32 (torch semantics)
    variance = jnp.mean(x_f32 * x_f32, axis=-1, keepdims=True)
    inv_rms = jax.lax.rsqrt(variance + eps)

    if x.dtype == jnp.float32:
        # f32 path: the .astype(old_dtype) round-trip is a no-op, so fuse
        # everything into a single VPU pass over the tile.
        o_ref[...] = (x_f32 * inv_rms * w_ref[...].astype(jnp.float32)).astype(
            o_ref.dtype)
    else:
        # Non-f32 (e.g. bf16): preserve torch's exact cast ordering —
        # (x * rsqrt) -> old_dtype, then promote-multiply by weight.
        normed = (x_f32 * inv_rms).astype(x.dtype)
        o_ref[...] = (normed.astype(jnp.float32)
                      * w_ref[...].astype(jnp.float32)).astype(o_ref.dtype)


def _tpu_config():
    """Per-generation (num_tensorcores, io_budget_bytes, vmem_limit_bytes)."""
    mib = 1024 * 1024
    vmem_cap = None
    try:
        info = pltpu.get_tpu_info()
        vmem_cap = getattr(info, "vmem_capacity_bytes", None)
    except Exception:  # pragma: no cover - e.g. interpret mode / older runtime
        vmem_cap = None
    if vmem_cap is not None and vmem_cap <= 64 * mib:
        # v7x-class: 64 MiB VMEM per TC, 2 TensorCores/chip.  ~14 MiB of IO
        # buffers keeps block_rows ~ 256-512 at H=4096 (already ~85% of the
        # HBM roofline) while leaving ample headroom under a 36 MiB cap.
        return 2, 14 * mib, 36 * mib
    if vmem_cap is not None:
        # v5e / v6e: 128 MiB VMEM, single TensorCore.  24 MiB of buffers is
        # past the roofline knee; 48 MiB scoped cap is comfortably safe.
        return 1, 24 * mib, 48 * mib
    # Unknown hardware: conservative settings that are safe everywhere.
    return 1, 14 * mib, 36 * mib


def minicpm_rmsnorm(hidden_states, weight, eps=1e-6, block_rows=None):
    """RMSNorm matching MiniCPMRMSNorm.forward.

    hidden_states: (..., H); weight: (H,).
    """
    orig_shape = hidden_states.shape
    H = orig_shape[-1]
    x2d = hidden_states.reshape(-1, H)
    rows = x2d.shape[0]
    w2d = weight.reshape(1, H)

    # Output dtype follows torch promotion of (old_dtype, weight.dtype).
    out_dtype = jnp.promote_types(hidden_states.dtype, weight.dtype)

    in_bytes = jnp.dtype(x2d.dtype).itemsize
    out_bytes = jnp.dtype(out_dtype).itemsize
    # Sublane packing: 8 rows/vreg for 32-bit, 16 for 16-bit, 32 for 8-bit.
    sublane = 8 * max(1, 4 // max(1, in_bytes))

    num_cores, vmem_budget_bytes, vmem_limit_bytes = _tpu_config()

    if block_rows is None:
        # Per-row VMEM cost: double-buffered input + output tiles, plus the
        # f32 temporaries (x_f32 / x^2 / normed) that materialize at tile size
        # when the input is narrower than 32 bits.  Weight tile is negligible.
        f32_tmp_bytes = 0 if in_bytes >= 4 else 2 * H * 4
        per_row_bytes = 2 * H * (in_bytes + out_bytes) + f32_tmp_bytes
        block_rows = max(sublane, vmem_budget_bytes // per_row_bytes)
        block_rows = max(sublane, (block_rows // sublane) * sublane)
        if num_cores > 1 and rows > 4 * sublane:
            # Multi-TC (v7x): aim for >=2 pipelined grid steps per TensorCore
            # so warm-up/drain DMA overlaps with compute on both cores.
            per_step = pl.cdiv(pl.cdiv(rows, 2 * num_cores), sublane) * sublane
            block_rows = min(block_rows, max(sublane, per_step))

    if block_rows >= rows:
        # Whole tensor in one tile: single grid step, no split overhead, and
        # block dim == full array dim is always a legal block shape (covers
        # row counts that are not sublane multiples without any padding).
        block_rows = rows
    else:
        # Sublane-aligned tile; a ragged last block is handled by the Pallas
        # pipeline (partial writeback), so no jnp.pad / slice HBM round-trips.
        block_rows = max(sublane, (min(block_rows, rows) // sublane) * sublane)

    grid = pl.cdiv(rows, block_rows)

    # TODO(synk): real MiniCPM hidden sizes (2304, 4096, ...) are multiples of
    # 128 (lane-dense stores); tiny demo H=32 is correct but lane-sparse.

    kernel = functools.partial(_rmsnorm_kernel, eps=eps)
    out2d = pl.pallas_call(
        kernel,
        out_shape=jax.ShapeDtypeStruct((rows, H), out_dtype),
        grid_spec=pltpu.PrefetchScalarGridSpec(
            num_scalar_prefetch=0,
            grid=(grid,),
            in_specs=[
                pl.BlockSpec((block_rows, H), lambda i: (i, 0)),
                # Weight: whole array resident in VMEM for the entire call —
                # no per-step re-DMA and no second pipeline buffer.
                pl.BlockSpec(memory_space=pltpu.MemorySpace.VMEM),
            ],
            out_specs=pl.BlockSpec((block_rows, H), lambda i: (i, 0)),
        ),
        compiler_params=pltpu.CompilerParams(
            dimension_semantics=("parallel",),
            vmem_limit_bytes=vmem_limit_bytes,
        ),
    )(x2d, w2d)

    return out2d.reshape(orig_shape[:-1] + (H,))


def _reference(hidden_states, weight, eps=1e-6):
    # Matches torch: f32 variance, f32 multiply by rsqrt, cast to old dtype,
    # then promote-multiply by weight.
    out_dtype = jnp.promote_types(hidden_states.dtype, weight.dtype)
    x32 = hidden_states.astype(jnp.float32)
    variance = jnp.mean(x32 * x32, axis=-1, keepdims=True)
    normed = (x32 * jax.lax.rsqrt(variance + eps)).astype(hidden_states.dtype)
    return (normed.astype(jnp.float32) * weight.astype(jnp.float32)).astype(out_dtype)


if __name__ == "__main__":
    key = jax.random.PRNGKey(0)

    # Small demo shape consistent with the module's forward.
    batch, seq, hidden = 2, 8, 32
    x = jax.random.normal(key, (batch, seq, hidden), dtype=jnp.float32)
    # Deterministic param init (matches nn.Parameter(torch.ones(hidden_size))).
    weight = jnp.ones((hidden,), dtype=jnp.float32)

    out = jax.block_until_ready(minicpm_rmsnorm(x, weight, eps=1e-6))
    ref = _reference(x, weight, eps=1e-6)
    assert out.shape == x.shape
    assert jnp.allclose(out, ref, atol=1e-5, rtol=1e-5), "mismatch vs reference"

    # Row count not a sublane multiple -> single full-extent block, no padding.
    x2 = jax.random.normal(jax.random.PRNGKey(1), (3, 7, hidden), dtype=jnp.float32)
    out2 = jax.block_until_ready(minicpm_rmsnorm(x2, weight, eps=1e-6))
    ref2 = _reference(x2, weight, eps=1e-6)
    assert out2.shape == x2.shape
    assert jnp.allclose(out2, ref2, atol=1e-5, rtol=1e-5), "mismatch (odd rows)"

    # Force a multi-step grid with a ragged last block (21 rows, 8-row tiles).
    out3 = jax.block_until_ready(minicpm_rmsnorm(x2, weight, eps=1e-6, block_rows=8))
    assert out3.shape == x2.shape
    assert jnp.allclose(out3, ref2, atol=1e-5, rtol=1e-5), "mismatch (ragged block)"

    # bf16 input exercises the torch cast-ordering path (output promotes to f32).
    xb = jax.random.normal(jax.random.PRNGKey(2), (batch, seq, hidden),
                           dtype=jnp.bfloat16)
    outb = jax.block_until_ready(minicpm_rmsnorm(xb, weight, eps=1e-6))
    refb = _reference(xb, weight, eps=1e-6)
    assert outb.dtype == refb.dtype
    assert jnp.allclose(outb, refb, atol=1e-2, rtol=1e-2), "mismatch (bf16)"

    print("KERNEL_OK")
</pallas_src>

<mosaic_0001>
module attributes {stable_mosaic.version = 11 : i64} {
  func.func @_rmsnorm_kernel(%arg0: i32, %arg1: memref<16x32xf32, #tpu.memory_space<vmem>>, %arg2: memref<1x32xf32, #tpu.memory_space<vmem>>, %arg3: memref<16x32xf32, #tpu.memory_space<vmem>>) attributes {dimension_semantics = [#tpu.dimension_semantics<parallel>], iteration_bounds = array<i64: 1>, scalar_prefetch = 0 : i64, scratch_operands = 0 : i64, tpu.core_type = #tpu.core_type<tc>, window_params = [{transform_indices = @transform_0, window_bounds = array<i64: 16, 32>}, {pipeline_mode = #tpu.pipeline_mode<synchronous>, transform_indices = @transform_1, window_bounds = array<i64: 1, 32>}, {transform_indices = @transform_2, window_bounds = array<i64: 16, 32>}]} {
    %c0 = arith.constant 0 : index
    %c0_0 = arith.constant 0 : index
    %0 = vector.load %arg1[%c0, %c0_0] : memref<16x32xf32, #tpu.memory_space<vmem>>, vector<16x32xf32>
    %1 = arith.mulf %0, %0 : vector<16x32xf32>
    %cst = arith.constant dense<0.000000e+00> : vector<16xf32>
    %2 = vector.multi_reduction <add>, %1, %cst [1] : vector<16x32xf32> to vector<16xf32>
    %3 = vector.shape_cast %2 : vector<16xf32> to vector<16x1xf32>
    %cst_1 = arith.constant 3.200000e+01 : f32
    %4 = vector.broadcast %cst_1 : f32 to vector<16x1xf32>
    %5 = arith.divf %3, %4 : vector<16x1xf32>
    %cst_2 = arith.constant 9.99999997E-7 : f32
    %6 = vector.broadcast %cst_2 : f32 to vector<16x1xf32>
    %7 = arith.addf %5, %6 : vector<16x1xf32>
    %8 = math.rsqrt %7 : vector<16x1xf32>
    %9 = vector.broadcast %8 : vector<16x1xf32> to vector<16x32xf32>
    %10 = arith.mulf %0, %9 : vector<16x32xf32>
    %c0_3 = arith.constant 0 : index
    %c0_4 = arith.constant 0 : index
    %11 = vector.load %arg2[%c0_3, %c0_4] : memref<1x32xf32, #tpu.memory_space<vmem>>, vector<1x32xf32>
    %12 = vector.broadcast %11 : vector<1x32xf32> to vector<16x32xf32>
    %13 = arith.mulf %10, %12 : vector<16x32xf32>
    %c0_5 = arith.constant 0 : index
    %c0_6 = arith.constant 0 : index
    %14 = vector.load %arg3[%c0_5, %c0_6] : memref<16x32xf32, #tpu.memory_space<vmem>>, vector<16x32xf32>
    tpu.vector_store %arg3[%c0_5, %c0_6], %13 {strides = array<i32>} : memref<16x32xf32, #tpu.memory_space<vmem>>, vector<16x32xf32>,
    return
  }
  func.func @transform_0(%arg0: i32) -> (i32, i32) {
    %c0_i32 = arith.constant 0 : i32
    %c0_i32_0 = arith.constant 0 : i32
    return %arg0, %c0_i32 : i32, i32
  }
  func.func @transform_1(%arg0: i32) -> (i32, i32) {
    %c0_i32 = arith.constant 0 : i32
    %c0_i32_0 = arith.constant 0 : i32
    %c0_i32_1 = arith.constant 0 : i32
    return %c0_i32, %c0_i32_0 : i32, i32
  }
  func.func @transform_2(%arg0: i32) -> (i32, i32) {
    %c0_i32 = arith.constant 0 : i32
    %c0_i32_0 = arith.constant 0 : i32
    return %arg0, %c0_i32 : i32, i32
  }
}

</mosaic_0001>

<llo_original>
// kernel: tpu_custom_call.1
$region0: #{tpu_custom_call.1}
  #allocation0 [shape = 'u32[]', space=smem, size = 0x4, offset = 0x4, fixed_abs, tag = 'smem constant byte address 0x4 - core index']
  #allocation1 [shape = 'u32[144,128]{1,0:T(1,128)}', space=vmem, size = 0x12000, scoped, tag = 'internal scratch']
  %s0 = inlined_call_operand.hbm [shape: f32[16,32], index: 0, kind: input, shape index: {}]
  %s1 = inlined_call_operand.vmem [shape: f32[1,32], index: 1, kind: input, shape index: {}]
  %s2 = inlined_call_operand.hbm [shape: f32[16,32], index: 2, kind: output, shape index: {}]
  %s3 = sld [smem:[#allocation0]]
  $region22: #{tpu_custom_call.1} parent=0
    _
  %s5 = ssub.s32 1, %s3
  %s6 = scalar_select 0, %s5, %s3
  $region1: #{tpu_custom_call.1} parent=0
    #allocation2 [shape = 'u8[8192]{0}', space=vmem, size = 0x2000, scoped, tag = 'input window, operand 0, single buffered']
    #allocation3 [shape = 's32[1]{0}', space=sflag, size = 0x4, scoped, tag = 'scoped memory for tpu_custom_call.1']
    #allocation4 [shape = 's32[1]{0}', space=sflag, size = 0x4, scoped, tag = 'scoped memory for tpu_custom_call.1']
    #allocation5 [shape = 'u8[8192]{0}', space=vmem, size = 0x2000, scoped, tag = 'output window, operand 0, single buffered']
    %7 = vsyncpa [#allocation3], 0
    %8 = vsyncpa [#allocation4], 0
    // Predicated region
    $region2: #{tpu_custom_call.1} parent=1 // pred_check
      _
    $region3: #{tpu_custom_call.1} parent=1 // pred_check_branch
      %10 = sbr.rel (0) target = $region5
    $region4: #{tpu_custom_call.1} parent=1 // pred_region
      %s12 = ssub.s32 256, 256
      %13 = vsyncadd [#allocation3], %s12
      %s14 = sshll.u32 [#allocation2], 4
      %s15 = int_to_ptr.vmem [resolvable:$true] %s14
      %20 = dma.hbm_to_vmem [thread:$0]  %s0, 256, %s15, [#allocation3], 128, 128, 8
    $region5: #{tpu_custom_call.1} parent=1 // pred_fallthru
      _
    // Predicated region
    $region6: #{tpu_custom_call.1} parent=1 // pred_check
      _
    $region7: #{tpu_custom_call.1} parent=1 // pred_check_branch
      %22 = sbr.rel (0) target = $region9
    $region8: #{tpu_custom_call.1} parent=1 // pred_region
      _
    $region9: #{tpu_custom_call.1} parent=1 // pred_fallthru
      _
    // Predicated region
    $region10: #{tpu_custom_call.1} parent=1 // pred_check
      _
    $region11: #{tpu_custom_call.1} parent=1 // pred_check_branch
      %24 = sbr.rel (0) target = $region13
    $region12: #{tpu_custom_call.1} parent=1 // pred_region
      %25 = dma.done [#allocation3], 256
    $region13: #{tpu_custom_call.1} parent=1 // pred_fallthru
      _
    %v26 = vld [vmem:[#allocation2] sm:$0xff]
    %v27 = vld [vmem:[#allocation2 + $0x8] sm:$0xff]
    %v28 = vmul.f32 %v26, %v26
    %v29 = vmul.f32 %v27, %v27
    %vm30 = vcmask 261120
    %v31 = vsel %vm30, %v28, 0.0
    %32 = vadd.xlane.f32.xlu0 %v31
    %v33 = vpop.xlane.xlu0 %32
    %v34 = vsel %vm30, %v29, 0.0
    %35 = vadd.xlane.f32.xlu0 %v34
    %v36 = vpop.xlane.xlu0 %35
    %v37 = vrcp.pop 32.0
    %v38 = vmul.f32 %v33, %v37
    %v39 = vmul.f32 %v36, %v37
    %v40 = vadd.f32 %v38, 1e-06
    %v41 = vadd.f32 %v39, 1e-06
    %v42 = vrsqrt.pop %v40
    %v43 = vrsqrt.pop %v41
    %v44 = vmul.f32 %v26, %v42
    %v45 = vmul.f32 %v27, %v43
    %v46 = vld [vmem:[%s1] sm:$0x1]
    %v48 = vlaneseq
    %v49 = vshrl.u32 %v48, 7
    %v50 = vsub.s32 0, %v49
    %v51 = vrot.slane %v46, %v50
    %v53 = vmul.f32 %v44, %v51
    %v54 = vmul.f32 %v45, %v51
    %55 = vst.msk [vmem:[#allocation5] sm:$0xff] %vm30, %v53
    %56 = vst.msk [vmem:[#allocation5 + $0x8] sm:$0xff] %vm30, %v54
    // Predicated region
    $region14: #{tpu_custom_call.1} parent=1 // pred_check
      _
    $region15: #{tpu_custom_call.1} parent=1 // pred_check_branch
      %58 = sbr.rel (0) target = $region17
    $region16: #{tpu_custom_call.1} parent=1 // pred_region
      %s60 = ssub.s32 256, 256
      %61 = vsyncadd [#allocation4], %s60
      %s62 = sshll.u32 [#allocation5], 4
      %s63 = int_to_ptr.vmem [resolvable:$true] %s62
      %68 = dma.vmem_to_hbm [thread:$0]  %s63, 256, %s2, [#allocation4], 128, 128, 8
    $region17: #{tpu_custom_call.1} parent=1 // pred_fallthru
      _
    // Predicated region
    $region18: #{tpu_custom_call.1} parent=1 // pred_check
      _
    $region19: #{tpu_custom_call.1} parent=1 // pred_check_branch
      %70 = sbr.rel (0) target = $region21
    $region20: #{tpu_custom_call.1} parent=1 // pred_region
      %71 = dma.done [#allocation4], 256
    $region21: #{tpu_custom_call.1} parent=1 // pred_fallthru
      _
    %72 = vsyncpa [#allocation3], 1
    %73 = vsyncpa [#allocation4], 1

</llo_original>
